<compile_context>
chip_gen: v5e
topology: v5e:2x2
jax: 0.10.0
libtpu: 0.0.40
codegen_flags: <defaults>
</compile_context>

<pallas_src>
import jax
import jax.numpy as jnp
import numpy as np
from jax.experimental import pallas as pl
from jax.experimental.pallas import tpu as pltpu

# Module-consistent small sizes.
IN_OUT_DIM = 16          # in_out_dim (conv1 input channels)
PITCH_DIM = 8            # pitch_dim == sequence length T (fc input = 64 * T)
C1 = 128                 # conv1 output channels
C2 = 64                  # conv2 output channels
OUT_DIM = 68 * 3         # fc output dim = 204
OUT_PAD = 256            # lane-dense padded fc output width
B = 2                    # batch


def _postnet_kernel(xt_ref, pitch_ref, w1_ref, b1_ref, w2_ref, b2_ref,
                    wfc_ref, fcb_ref, o_ref):
    """Fused conv1+relu+conv2+relu+(+pitch)+fc for the whole (tiny) batch.

    xt_ref    : (T*B, Cin)      bf16 input, time-interleaved rows (r = t*B + b)
    pitch_ref : (T*B, C2)       f32 pitch, same row order, channel along lanes
    w1_ref    : (Cin, 3*C1)     bf16 conv1 weight, [i, k*C1 + o] = w1[o, i, k]
    b1_ref    : (1, C1)         f32
    w2_ref    : (3*C1, C2)      bf16 conv2 weight, [k*C1 + c, o] = w2[o, c, k]
    b2_ref    : (1, C2)         f32
    wfc_ref   : (T*C2, OUT_PAD) bf16 fc weight, time-major rows, zero-padded lanes
    fcb_ref   : (1, OUT_PAD)    f32
    o_ref     : (B, OUT_PAD)    f32
    """
    f32 = jnp.float32
    bf16 = jnp.bfloat16
    Bn = o_ref.shape[0]
    nrow = xt_ref.shape[0]
    Tn = nrow // Bn
    C1k = w1_ref.shape[1] // 3
    C2k = w2_ref.shape[1]

    # Boundary masks in the time-interleaved layout: first/last B rows.
    row = jax.lax.broadcasted_iota(jnp.int32, (nrow, C1k), 0)
    is_first = row < Bn            # t == 0 rows
    is_last = row >= (nrow - Bn)   # t == T-1 rows

    def shift_down(v):   # out[r] = v[r - B]  (conv tap k=0), zero at t == 0
        return jnp.where(is_first, 0.0, pltpu.roll(v, Bn, 0))

    def shift_up(v):     # out[r] = v[r + B]  (conv tap k=2), zero at t == T-1
        return jnp.where(is_last, 0.0, pltpu.roll(v, nrow - Bn, 0))

    # conv1: one K=Cin matmul over input channels, then re-align the 3 tap blocks.
    q = jnp.dot(xt_ref[...], w1_ref[...], preferred_element_type=f32)   # (T*B, 3*C1)
    h1 = (shift_down(q[:, 0:C1k]) + q[:, C1k:2 * C1k]
          + shift_up(q[:, 2 * C1k:3 * C1k]) + b1_ref[...])
    h1 = jnp.maximum(h1, 0.0)                                           # (T*B, C1) f32

    # conv2: im2col on the contraction dim (lane-aligned concat), one K=3*C1 matmul.
    rhs2 = jnp.concatenate([shift_down(h1), h1, shift_up(h1)], axis=1)  # (T*B, 3*C1)
    h2 = jnp.dot(rhs2.astype(bf16), w2_ref[...],
                 preferred_element_type=f32) + b2_ref[...]
    h2 = jnp.maximum(h2, 0.0)                                           # (T*B, C2) f32

    # fc: add pitch once, pack the 8 contiguous time slices into (B, T*C2)
    # along lanes, then a single K=T*C2 matmul against the time-major weight.
    h2p = h2 + pitch_ref[...]                                           # (T*B, C2) f32
    fc_in = jnp.concatenate(
        [h2p[t * Bn:(t + 1) * Bn, :] for t in range(Tn)], axis=1)       # (B, T*C2)
    o_ref[...] = (jnp.dot(fc_in.astype(bf16), wfc_ref[...],
                          preferred_element_type=f32) + fcb_ref[...])


def prepare_params(params):
    """One-time re-layout (and bf16 cast) of the PyTorch-style parameters."""
    w1, b1, w2, b2, fcw, fcb = params
    # conv1 (C1, Cin, 3) -> (Cin, 3*C1); column index = k*C1 + out_channel
    w1cat = jnp.transpose(w1, (1, 2, 0)).reshape(IN_OUT_DIM, 3 * C1).astype(jnp.bfloat16)
    # conv2 (C2, C1, 3) -> (3*C1, C2); row index = k*C1 + in_channel
    w2cat = jnp.transpose(w2, (2, 1, 0)).reshape(3 * C1, C2).astype(jnp.bfloat16)
    # fc (OUT, C2*T) -> time-major rows (T*C2, OUT), zero-padded to 256 lanes
    wfc_tm = jnp.transpose(fcw.reshape(OUT_DIM, C2, PITCH_DIM), (2, 1, 0))
    wfc_tm = wfc_tm.reshape(PITCH_DIM * C2, OUT_DIM)
    wfc_tm = jnp.pad(wfc_tm, ((0, 0), (0, OUT_PAD - OUT_DIM))).astype(jnp.bfloat16)
    fcb_row = jnp.pad(fcb, (0, OUT_PAD - OUT_DIM)).reshape(1, OUT_PAD)
    return (w1cat, b1.reshape(1, C1), w2cat, b2.reshape(1, C2), wfc_tm, fcb_row)


@jax.jit
def postnet_forward(x, pitch, packed):
    w1cat, b1r, w2cat, b2r, wfc_tm, fcb_row = packed
    Bn, Cin, Tn = x.shape

    # Tiny per-call re-layouts of the *dynamic* inputs: time-interleaved rows
    # (row = t*B + b).  Conv input is cast to bf16 for the MXU; pitch stays f32
    # (it is only used in an element-wise add).
    xt = jnp.transpose(x, (2, 0, 1)).reshape(Tn * Bn, Cin).astype(jnp.bfloat16)
    pitch_ti = jnp.transpose(pitch.reshape(Bn, C2, Tn), (2, 0, 1)).reshape(Tn * Bn, C2)

    # Single un-pipelined invocation: every operand fully resident in VMEM
    # (total < 1 MB), no grid / double-buffering machinery.
    out_pad = pl.pallas_call(
        _postnet_kernel,
        out_shape=jax.ShapeDtypeStruct((Bn, OUT_PAD), jnp.float32),
    )(xt, pitch_ti, w1cat, b1r, w2cat, b2r, wfc_tm, fcb_row)

    return out_pad[:, :OUT_DIM]


def reference_forward(x, pitch, params):
    """Pure-JAX reference matching the PyTorch module semantics (ground truth)."""
    w1, b1, w2, b2, fcw, fcb = params
    hp = jax.lax.Precision.HIGHEST
    dn = ('NCH', 'OIH', 'NCH')
    h1 = jax.lax.conv_general_dilated(x, w1, window_strides=(1,), padding=((1, 1),),
                                      dimension_numbers=dn, precision=hp)
    h1 = jnp.maximum(h1 + b1[None, :, None], 0.0)
    h2 = jax.lax.conv_general_dilated(h1, w2, window_strides=(1,), padding=((1, 1),),
                                      dimension_numbers=dn, precision=hp)
    h2 = jnp.maximum(h2 + b2[None, :, None], 0.0)
    flat = h2.reshape(x.shape[0], -1) + pitch
    return jnp.dot(flat, fcw.T, precision=hp) + fcb[None, :]


def make_params(key):
    ks = jax.random.split(key, 6)
    w1 = 0.1 * jax.random.normal(ks[0], (C1, IN_OUT_DIM, 3), jnp.float32)   # (out, in, k)
    b1 = 0.1 * jax.random.normal(ks[1], (C1,), jnp.float32)
    w2 = 0.1 * jax.random.normal(ks[2], (C2, C1, 3), jnp.float32)
    b2 = 0.1 * jax.random.normal(ks[3], (C2,), jnp.float32)
    fcw = 0.05 * jax.random.normal(ks[4], (OUT_DIM, C2 * PITCH_DIM), jnp.float32)
    fcb = 0.05 * jax.random.normal(ks[5], (OUT_DIM,), jnp.float32)
    return (w1, b1, w2, b2, fcw, fcb)


if __name__ == "__main__":
    key = jax.random.PRNGKey(0)
    kp, kx, kpitch = jax.random.split(key, 3)
    params = make_params(kp)
    raw_pred_lm3d = jax.random.normal(kx, (B, IN_OUT_DIM, PITCH_DIM), jnp.float32)
    pitch = jax.random.normal(kpitch, (B, C2 * PITCH_DIM), jnp.float32)

    packed = prepare_params(params)          # static weight re-layout + bf16, done once
    out = postnet_forward(raw_pred_lm3d, pitch, packed)
    out = jax.block_until_ready(out)

    ref = jax.block_until_ready(reference_forward(raw_pred_lm3d, pitch, params))
    # Tolerance sized for bf16-operand matmuls (f32 accumulation) vs the
    # HIGHEST-precision reference (~1e-2 abs worst-case on these magnitudes).
    np.testing.assert_allclose(np.asarray(out), np.asarray(ref), rtol=5e-2, atol=5e-2)

    assert out.shape == (B, OUT_DIM)
    print("KERNEL_OK")
</pallas_src>

<mosaic_0001>
module attributes {stable_mosaic.version = 11 : i64} {
  func.func @_postnet_kernel(%arg0: memref<16x16xbf16, #tpu.memory_space<vmem>>, %arg1: memref<16x64xf32, #tpu.memory_space<vmem>>, %arg2: memref<16x384xbf16, #tpu.memory_space<vmem>>, %arg3: memref<1x128xf32, #tpu.memory_space<vmem>>, %arg4: memref<384x64xbf16, #tpu.memory_space<vmem>>, %arg5: memref<1x64xf32, #tpu.memory_space<vmem>>, %arg6: memref<512x256xbf16, #tpu.memory_space<vmem>>, %arg7: memref<1x256xf32, #tpu.memory_space<vmem>>, %arg8: memref<2x256xf32, #tpu.memory_space<vmem>>) attributes {dimension_semantics = [], scalar_prefetch = 0 : i64, scratch_operands = 0 : i64, tpu.core_type = #tpu.core_type<tc>} {
    %0 = tpu.iota {dimensions = array<i32: 0>} : vector<16x128xi32>
    %c2_i32 = arith.constant 2 : i32
    %1 = vector.broadcast %c2_i32 : i32 to vector<16x128xi32>
    %2 = arith.cmpi slt, %0, %1 : vector<16x128xi32>
    %c14_i32 = arith.constant 14 : i32
    %3 = vector.broadcast %c14_i32 : i32 to vector<16x128xi32>
    %4 = arith.cmpi sge, %0, %3 : vector<16x128xi32>
    %c0 = arith.constant 0 : index
    %c0_0 = arith.constant 0 : index
    %5 = vector.load %arg0[%c0, %c0_0] : memref<16x16xbf16, #tpu.memory_space<vmem>>, vector<16x16xbf16>
    %c0_1 = arith.constant 0 : index
    %c0_2 = arith.constant 0 : index
    %6 = vector.load %arg2[%c0_1, %c0_2] : memref<16x384xbf16, #tpu.memory_space<vmem>>, vector<16x384xbf16>
    %cst = arith.constant dense<0.000000e+00> : vector<16x384xf32>
    %7 = tpu.matmul %5, %6, %cst {dimension_numbers = #tpu.dot_dimension_numbers<[1], [0], [0], [1], [0, 0, 1, 1], [], []>} : vector<16x16xbf16>, vector<16x384xbf16>, vector<16x384xf32> -> vector<16x384xf32>
    %8 = vector.extract_strided_slice %7 {offsets = [0, 0], sizes = [16, 128], strides = [1, 1]} : vector<16x384xf32> to vector<16x128xf32>
    %c2_i32_3 = arith.constant 2 : i32
    %9 = tpu.dynamic_rotate %8 by %c2_i32_3 dim 0 : vector<16x128xf32>, i32 -> vector<16x128xf32>
    %cst_4 = arith.constant 0.000000e+00 : f32
    %10 = vector.broadcast %cst_4 : f32 to vector<16x128xf32>
    %11 = arith.select %2, %10, %9 : vector<16x128xi1>, vector<16x128xf32>
    %12 = vector.extract_strided_slice %7 {offsets = [0, 128], sizes = [16, 128], strides = [1, 1]} : vector<16x384xf32> to vector<16x128xf32>
    %13 = arith.addf %11, %12 : vector<16x128xf32>
    %14 = vector.extract_strided_slice %7 {offsets = [0, 256], sizes = [16, 128], strides = [1, 1]} : vector<16x384xf32> to vector<16x128xf32>
    %c14_i32_5 = arith.constant 14 : i32
    %15 = tpu.dynamic_rotate %14 by %c14_i32_5 dim 0 : vector<16x128xf32>, i32 -> vector<16x128xf32>
    %cst_6 = arith.constant 0.000000e+00 : f32
    %16 = vector.broadcast %cst_6 : f32 to vector<16x128xf32>
    %17 = arith.select %4, %16, %15 : vector<16x128xi1>, vector<16x128xf32>
    %18 = arith.addf %13, %17 : vector<16x128xf32>
    %c0_7 = arith.constant 0 : index
    %c0_8 = arith.constant 0 : index
    %19 = vector.load %arg3[%c0_7, %c0_8] : memref<1x128xf32, #tpu.memory_space<vmem>>, vector<1x128xf32>
    %20 = vector.broadcast %19 : vector<1x128xf32> to vector<16x128xf32>
    %21 = arith.addf %18, %20 : vector<16x128xf32>
    %cst_9 = arith.constant 0.000000e+00 : f32
    %22 = vector.broadcast %cst_9 : f32 to vector<16x128xf32>
    %23 = arith.maximumf %21, %22 : vector<16x128xf32>
    %c2_i32_10 = arith.constant 2 : i32
    %24 = tpu.dynamic_rotate %23 by %c2_i32_10 dim 0 : vector<16x128xf32>, i32 -> vector<16x128xf32>
    %cst_11 = arith.constant 0.000000e+00 : f32
    %25 = vector.broadcast %cst_11 : f32 to vector<16x128xf32>
    %26 = arith.select %2, %25, %24 : vector<16x128xi1>, vector<16x128xf32>
    %c14_i32_12 = arith.constant 14 : i32
    %27 = tpu.dynamic_rotate %23 by %c14_i32_12 dim 0 : vector<16x128xf32>, i32 -> vector<16x128xf32>
    %cst_13 = arith.constant 0.000000e+00 : f32
    %28 = vector.broadcast %cst_13 : f32 to vector<16x128xf32>
    %29 = arith.select %4, %28, %27 : vector<16x128xi1>, vector<16x128xf32>
    %30 = tpu.concatenate %26, %23, %29 in 1 : vector<16x128xf32>, vector<16x128xf32>, vector<16x128xf32> -> vector<16x384xf32>
    %31 = arith.truncf %30 : vector<16x384xf32> to vector<16x384xbf16>
    %c0_14 = arith.constant 0 : index
    %c0_15 = arith.constant 0 : index
    %32 = vector.load %arg4[%c0_14, %c0_15] : memref<384x64xbf16, #tpu.memory_space<vmem>>, vector<384x64xbf16>
    %cst_16 = arith.constant dense<0.000000e+00> : vector<16x64xf32>
    %33 = tpu.matmul %31, %32, %cst_16 {dimension_numbers = #tpu.dot_dimension_numbers<[1], [0], [0], [1], [0, 0, 1, 1], [], []>} : vector<16x384xbf16>, vector<384x64xbf16>, vector<16x64xf32> -> vector<16x64xf32>
    %c0_17 = arith.constant 0 : index
    %c0_18 = arith.constant 0 : index
    %34 = vector.load %arg5[%c0_17, %c0_18] : memref<1x64xf32, #tpu.memory_space<vmem>>, vector<1x64xf32>
    %35 = vector.broadcast %34 : vector<1x64xf32> to vector<16x64xf32>
    %36 = arith.addf %33, %35 : vector<16x64xf32>
    %cst_19 = arith.constant 0.000000e+00 : f32
    %37 = vector.broadcast %cst_19 : f32 to vector<16x64xf32>
    %38 = arith.maximumf %36, %37 : vector<16x64xf32>
    %c0_20 = arith.constant 0 : index
    %c0_21 = arith.constant 0 : index
    %39 = vector.load %arg1[%c0_20, %c0_21] : memref<16x64xf32, #tpu.memory_space<vmem>>, vector<16x64xf32>
    %40 = arith.addf %38, %39 : vector<16x64xf32>
    %41 = vector.extract_strided_slice %40 {offsets = [0, 0], sizes = [2, 64], strides = [1, 1]} : vector<16x64xf32> to vector<2x64xf32>
    %42 = vector.extract_strided_slice %40 {offsets = [2, 0], sizes = [2, 64], strides = [1, 1]} : vector<16x64xf32> to vector<2x64xf32>
    %43 = vector.extract_strided_slice %40 {offsets = [4, 0], sizes = [2, 64], strides = [1, 1]} : vector<16x64xf32> to vector<2x64xf32>
    %44 = vector.extract_strided_slice %40 {offsets = [6, 0], sizes = [2, 64], strides = [1, 1]} : vector<16x64xf32> to vector<2x64xf32>
    %45 = vector.extract_strided_slice %40 {offsets = [8, 0], sizes = [2, 64], strides = [1, 1]} : vector<16x64xf32> to vector<2x64xf32>
    %46 = vector.extract_strided_slice %40 {offsets = [10, 0], sizes = [2, 64], strides = [1, 1]} : vector<16x64xf32> to vector<2x64xf32>
    %47 = vector.extract_strided_slice %40 {offsets = [12, 0], sizes = [2, 64], strides = [1, 1]} : vector<16x64xf32> to vector<2x64xf32>
    %48 = vector.extract_strided_slice %40 {offsets = [14, 0], sizes = [2, 64], strides = [1, 1]} : vector<16x64xf32> to vector<2x64xf32>
    %49 = tpu.concatenate %41, %42, %43, %44, %45, %46, %47, %48 in 1 : vector<2x64xf32>, vector<2x64xf32>, vector<2x64xf32>, vector<2x64xf32>, vector<2x64xf32>, vector<2x64xf32>, vector<2x64xf32>, vector<2x64xf32> -> vector<2x512xf32>
    %50 = arith.truncf %49 : vector<2x512xf32> to vector<2x512xbf16>
    %c0_22 = arith.constant 0 : index
    %c0_23 = arith.constant 0 : index
    %51 = vector.load %arg6[%c0_22, %c0_23] : memref<512x256xbf16, #tpu.memory_space<vmem>>, vector<512x256xbf16>
    %cst_24 = arith.constant dense<0.000000e+00> : vector<2x256xf32>
    %52 = tpu.matmul %50, %51, %cst_24 {dimension_numbers = #tpu.dot_dimension_numbers<[1], [0], [0], [1], [0, 0, 1, 1], [], []>} : vector<2x512xbf16>, vector<512x256xbf16>, vector<2x256xf32> -> vector<2x256xf32>
    %c0_25 = arith.constant 0 : index
    %c0_26 = arith.constant 0 : index
    %53 = vector.load %arg7[%c0_25, %c0_26] : memref<1x256xf32, #tpu.memory_space<vmem>>, vector<1x256xf32>
    %54 = vector.broadcast %53 : vector<1x256xf32> to vector<2x256xf32>
    %55 = arith.addf %52, %54 : vector<2x256xf32>
    %c0_27 = arith.constant 0 : index
    %c0_28 = arith.constant 0 : index
    %56 = vector.load %arg8[%c0_27, %c0_28] : memref<2x256xf32, #tpu.memory_space<vmem>>, vector<2x256xf32>
    tpu.vector_store %arg8[%c0_27, %c0_28], %55 {strides = array<i32>} : memref<2x256xf32, #tpu.memory_space<vmem>>, vector<2x256xf32>,
    return
  }
}

</mosaic_0001>

<llo_original>
// kernel: postnet_forward.1
$region0: #{postnet_forward.1}
  #allocation0 [shape = 'u32[]', space=smem, size = 0x4, offset = 0x4, fixed_abs, tag = 'smem constant byte address 0x4 - core index']
  #allocation1 [shape = 'u32[72,128]{1,0:T(1,128)}', space=vmem, size = 0x9000, scoped, tag = 'internal scratch']
  %s0 = inlined_call_operand.vmem [shape: bf16[16,16], index: 0, kind: input, shape index: {}]
  %s1 = inlined_call_operand.vmem [shape: f32[16,64], index: 1, kind: input, shape index: {}]
  %s2 = inlined_call_operand.vmem [shape: bf16[16,384], index: 2, kind: input, shape index: {}]
  %s3 = inlined_call_operand.vmem [shape: f32[1,128], index: 3, kind: input, shape index: {}]
  %s4 = inlined_call_operand.vmem [shape: bf16[384,64], index: 4, kind: input, shape index: {}]
  %s5 = inlined_call_operand.vmem [shape: f32[1,64], index: 5, kind: input, shape index: {}]
  %s6 = inlined_call_operand.hbm [shape: bf16[512,256], index: 6, kind: input, shape index: {}]
  %s7 = inlined_call_operand.vmem [shape: f32[1,256], index: 7, kind: input, shape index: {}]
  %s8 = inlined_call_operand.hbm [shape: f32[2,256], index: 8, kind: output, shape index: {}]
  %s9 = sld [smem:[#allocation0]]
  $region46: #{postnet_forward.1} parent=0
    _
  %s11 = ssub.s32 1, %s9
  %s12 = scalar_select 0, %s11, %s9
  $region1: #{postnet_forward.1} parent=0
    #allocation2 [shape = 'u8[262144]{0}', space=vmem, size = 0x40000, scoped, tag = 'input window, operand 6, single buffered']
    #allocation3 [shape = 's32[1]{0}', space=sflag, size = 0x4, scoped, tag = 'scoped memory for postnet_forward.1']
    #allocation4 [shape = 's32[1]{0}', space=sflag, size = 0x4, scoped, tag = 'scoped memory for postnet_forward.1']
    #allocation5 [shape = 'u8[2048]{0}', space=vmem, size = 0x800, scoped, tag = 'output window, operand 0, single buffered']
    %13 = vsyncpa [#allocation3], 0
    %14 = vsyncpa [#allocation4], 0
    // Predicated region
    $region2: #{postnet_forward.1} parent=1 // pred_check
      _
    $region3: #{postnet_forward.1} parent=1 // pred_check_branch
      %16 = sbr.rel (0) target = $region5
    $region4: #{postnet_forward.1} parent=1 // pred_region
      _
    $region5: #{postnet_forward.1} parent=1 // pred_fallthru
      _
    // Predicated region
    $region6: #{postnet_forward.1} parent=1 // pred_check
      _
    $region7: #{postnet_forward.1} parent=1 // pred_check_branch
      %18 = sbr.rel (0) target = $region9
    $region8: #{postnet_forward.1} parent=1 // pred_region
      _
    $region9: #{postnet_forward.1} parent=1 // pred_fallthru
      _
    // Predicated region
    $region10: #{postnet_forward.1} parent=1 // pred_check
      _
    $region11: #{postnet_forward.1} parent=1 // pred_check_branch
      %20 = sbr.rel (0) target = $region13
    $region12: #{postnet_forward.1} parent=1 // pred_region
      _
    $region13: #{postnet_forward.1} parent=1 // pred_fallthru
      _
    // Predicated region
    $region14: #{postnet_forward.1} parent=1 // pred_check
      _
    $region15: #{postnet_forward.1} parent=1 // pred_check_branch
      %22 = sbr.rel (0) target = $region17
    $region16: #{postnet_forward.1} parent=1 // pred_region
      _
    $region17: #{postnet_forward.1} parent=1 // pred_fallthru
      _
    // Predicated region
    $region18: #{postnet_forward.1} parent=1 // pred_check
      _
    $region19: #{postnet_forward.1} parent=1 // pred_check_branch
      %24 = sbr.rel (0) target = $region21
    $region20: #{postnet_forward.1} parent=1 // pred_region
      _
    $region21: #{postnet_forward.1} parent=1 // pred_fallthru
      _
    // Predicated region
    $region22: #{postnet_forward.1} parent=1 // pred_check
      _
    $region23: #{postnet_forward.1} parent=1 // pred_check_branch
      %26 = sbr.rel (0) target = $region25
    $region24: #{postnet_forward.1} parent=1 // pred_region
      _
    $region25: #{postnet_forward.1} parent=1 // pred_fallthru
      _
    // Predicated region
    $region26: #{postnet_forward.1} parent=1 // pred_check
      _
    $region27: #{postnet_forward.1} parent=1 // pred_check_branch
      %28 = sbr.rel (0) target = $region29
    $region28: #{postnet_forward.1} parent=1 // pred_region
      %30 = vsyncadd [#allocation3], 0
      %s31 = sshll.u32 %s6, 4
      %s32 = int_to_ptr.hbm [resolvable:$true] %s31
      %s33 = sshll.u32 [#allocation2], 4
      %s34 = int_to_ptr.vmem [resolvable:$true] %s33
      %39 = dma.hbm_to_vmem [thread:$0]  %s32, 8192, %s34, [#allocation3], 128, 128, 8
    $region29: #{postnet_forward.1} parent=1 // pred_fallthru
      _
    // Predicated region
    $region30: #{postnet_forward.1} parent=1 // pred_check
      _
    $region31: #{postnet_forward.1} parent=1 // pred_check_branch
      %41 = sbr.rel (0) target = $region33
    $region32: #{postnet_forward.1} parent=1 // pred_region
      _
    $region33: #{postnet_forward.1} parent=1 // pred_fallthru
      _
    // Predicated region
    $region34: #{postnet_forward.1} parent=1 // pred_check
      _
    $region35: #{postnet_forward.1} parent=1 // pred_check_branch
      %43 = sbr.rel (0) target = $region37
    $region36: #{postnet_forward.1} parent=1 // pred_region
      %45 = dma.done [#allocation3], 8192
    $region37: #{postnet_forward.1} parent=1 // pred_fallthru
      _
    %v47 = vlaneseq
    %v48 = vshrl.u32 %v47, 7
    %v49 = vadd.s32 %v48, 8
    %vm50 = vcmp.lt.s32.totalorder %v48, 2
    %vm51 = vcmp.lt.s32.totalorder %v49, 2
    %vm52 = vcmp.ge.s32.totalorder %v48, 14
    %vm53 = vcmp.ge.s32.totalorder %v49, 14
    %v54 = vld [vmem:[%s0] sm:$0xf]
    %v55 = vld [vmem:[%s0 + $0x4] sm:$0xf]
    %v56 = vld [vmem:[%s2] sm:$0xff]
    %v57 = vld [vmem:[%s2 + $0x8] sm:$0xf]
    %v58 = vld [vmem:[%s2 + $0xc] sm:$0xff]
    %v59 = vld [vmem:[%s2 + $0x14] sm:$0xf]
    %v62 = vunpack.c.l.b16 %v54
    %v63 = vunpack.c.l.b16 %v55
    %v64 = vpack.c.b16 %v63, %v62
    %v69 = vunpack.c.l.b16 %v56
    %v70 = vunpack.c.h.b16 %v56
    %v71 = vunpack.c.l.b16 %v57
    %v72 = vunpack.c.l.b16 %v58
    %v73 = vunpack.c.h.b16 %v58
    %v74 = vunpack.c.l.b16 %v59
    %v75 = vpack.c.b16 %v72, %v69
    %v76 = vpack.c.b16 %v73, %v70
    %v77 = vpack.c.b16 %v74, %v71
    %vm81 = vcmask 130048
    %v83 = vsel %vm81, %v64, 0
    %85 = vmatpush.bf16.msra.mxu0 0
    %86 = vmatpush.bf16.msra.mxu0 0
    %87 = vmatpush.bf16.msra.mxu0 0
    %88 = vmatpush.bf16.msra.mxu0 0
    %89 = vmatpush.bf16.msra.mxu0 0
    %90 = vmatpush.bf16.msra.mxu0 0
    %91 = vmatpush.bf16.msra.mxu0 0
    %92 = vmatpush.bf16.msra.mxu0 %v75
    %93 = vmatmul.bf16.gmra.mxu0 %v83
    %v94 = vpop.f32.mrf.mxu0
    %v95 = vadd.f32 0.0, %v94
    %v96 = vpop.f32.mrf.mxu0
    %v97 = vadd.f32 0.0, %v96
    %98 = vdwg.mxu0
    %99 = vmatpush.bf16.msra.mxu0 0
    %100 = vmatpush.bf16.msra.mxu0 0
    %101 = vmatpush.bf16.msra.mxu0 0
    %102 = vmatpush.bf16.msra.mxu0 0
    %103 = vmatpush.bf16.msra.mxu0 0
    %104 = vmatpush.bf16.msra.mxu0 0
    %105 = vmatpush.bf16.msra.mxu0 0
    %106 = vmatpush.bf16.msra.mxu0 %v76
    %107 = vmatmul.bf16.gmra.mxu0 %v83
    %v108 = vpop.f32.mrf.mxu0
    %v109 = vadd.f32 0.0, %v108
    %v110 = vpop.f32.mrf.mxu0
    %v111 = vadd.f32 0.0, %v110
    %112 = vdwg.mxu0
    %113 = vmatpush.bf16.msra.mxu0 0
    %114 = vmatpush.bf16.msra.mxu0 0
    %115 = vmatpush.bf16.msra.mxu0 0
    %116 = vmatpush.bf16.msra.mxu0 0
    %117 = vmatpush.bf16.msra.mxu0 0
    %118 = vmatpush.bf16.msra.mxu0 0
    %119 = vmatpush.bf16.msra.mxu0 0
    %120 = vmatpush.bf16.msra.mxu0 %v77
    %121 = vmatmul.bf16.gmra.mxu0 %v83
    %v122 = vpop.f32.mrf.mxu0
    %v123 = vadd.f32 0.0, %v122
    %v124 = vpop.f32.mrf.mxu0
    %v125 = vadd.f32 0.0, %v124
    %126 = vdwg.mxu0
    %v127 = vrot.slane %v95, 6
    %v128 = vrot.slane %v97, 6
    %v129 = vsel %vm50, %v127, %v128
    %v130 = vsel %vm50, %v128, %v127
    %v131 = vsel %vm50, 0.0, %v130
    %v132 = vsel %vm51, 0.0, %v129
    %v133 = vadd.f32 %v131, %v109
    %v134 = vadd.f32 %v132, %v111
    %v135 = vrot.slane %v123, 2
    %v136 = vrot.slane %v125, 2
    %vm137 = vcmp.lt.s32.totalorder %v48, 6
    %v138 = vsel %vm137, %v135, %v136
    %v139 = vsel %vm137, %v136, %v135
    %v140 = vsel %vm52, 0.0, %v138
    %v141 = vsel %vm53, 0.0, %v139
    %v142 = vadd.f32 %v133, %v140
    %v143 = vadd.f32 %v134, %v141
    %v144 = vld [vmem:[%s3] sm:$0x1]
    %v146 = vperm.slane %v144, 0
    %v148 = vadd.f32 %v142, %v146
    %v149 = vadd.f32 %v143, %v146
    %v150 = vmax.f32 %v148, 0.0
    %v151 = vmax.f32 %v149, 0.0
    %v152 = vrot.slane %v150, 6
    %v153 = vrot.slane %v151, 6
    %v154 = vsel %vm50, %v152, %v153
    %v155 = vsel %vm50, %v153, %v152
    %v156 = vsel %vm50, 0.0, %v155
    %v157 = vsel %vm51, 0.0, %v154
    %v158 = vrot.slane %v150, 2
    %v159 = vrot.slane %v151, 2
    %v160 = vsel %vm137, %v158, %v159
    %v161 = vsel %vm137, %v159, %v158
    %v162 = vsel %vm52, 0.0, %v160
    %v163 = vsel %vm53, 0.0, %v161
    %v164 = vpack.c.bf16 %v157, %v156
    %v165 = vpack.c.bf16 %v151, %v150
    %v166 = vpack.c.bf16 %v163, %v162
    %v167 = vld [vmem:[%s4] sm:$0xf]
    %v168 = vld [vmem:[%s4 + $0x4] sm:$0xf]
    %v169 = vld [vmem:[%s4 + $0x8] sm:$0xf]
    %v170 = vld [vmem:[%s4 + $0xc] sm:$0xf]
    %v171 = vld [vmem:[%s4 + $0x10] sm:$0xf]
    %v172 = vld [vmem:[%s4 + $0x14] sm:$0xf]
    %v173 = vld [vmem:[%s4 + $0x18] sm:$0xf]
    %v174 = vld [vmem:[%s4 + $0x1c] sm:$0xf]
    %v175 = vld [vmem:[%s4 + $0x20] sm:$0xf]
    %v176 = vld [vmem:[%s4 + $0x24] sm:$0xf]
    %v177 = vld [vmem:[%s4 + $0x28] sm:$0xf]
    %v178 = vld [vmem:[%s4 + $0x2c] sm:$0xf]
    %v179 = vld [vmem:[%s4 + $0x30] sm:$0xf]
    %v180 = vld [vmem:[%s4 + $0x34] sm:$0xf]
    %v181 = vld [vmem:[%s4 + $0x38] sm:$0xf]
    %v182 = vld [vmem:[%s4 + $0x3c] sm:$0xf]
    %v183 = vld [vmem:[%s4 + $0x40] sm:$0xf]
    %v184 = vld [vmem:[%s4 + $0x44] sm:$0xf]
    %v185 = vld [vmem:[%s4 + $0x48] sm:$0xf]
    %v186 = vld [vmem:[%s4 + $0x4c] sm:$0xf]
    %v187 = vld [vmem:[%s4 + $0x50] sm:$0xf]
    %v188 = vld [vmem:[%s4 + $0x54] sm:$0xf]
    %v189 = vld [vmem:[%s4 + $0x58] sm:$0xf]
    %v190 = vld [vmem:[%s4 + $0x5c] sm:$0xf]
    %v191 = vld [vmem:[%s4 + $0x60] sm:$0xf]
    %v192 = vld [vmem:[%s4 + $0x64] sm:$0xf]
    %v193 = vld [vmem:[%s4 + $0x68] sm:$0xf]
    %v194 = vld [vmem:[%s4 + $0x6c] sm:$0xf]
    %v195 = vld [vmem:[%s4 + $0x70] sm:$0xf]
    %v196 = vld [vmem:[%s4 + $0x74] sm:$0xf]
    %v197 = vld [vmem:[%s4 + $0x78] sm:$0xf]
    %v198 = vld [vmem:[%s4 + $0x7c] sm:$0xf]
    %v199 = vld [vmem:[%s4 + $0x80] sm:$0xf]
    %v200 = vld [vmem:[%s4 + $0x84] sm:$0xf]
    %v201 = vld [vmem:[%s4 + $0x88] sm:$0xf]
    %v202 = vld [vmem:[%s4 + $0x8c] sm:$0xf]
    %v203 = vld [vmem:[%s4 + $0x90] sm:$0xf]
    %v204 = vld [vmem:[%s4 + $0x94] sm:$0xf]
    %v205 = vld [vmem:[%s4 + $0x98] sm:$0xf]
    %v206 = vld [vmem:[%s4 + $0x9c] sm:$0xf]
    %v207 = vld [vmem:[%s4 + $0xa0] sm:$0xf]
    %v208 = vld [vmem:[%s4 + $0xa4] sm:$0xf]
    %v209 = vld [vmem:[%s4 + $0xa8] sm:$0xf]
    %v210 = vld [vmem:[%s4 + $0xac] sm:$0xf]
    %v211 = vld [vmem:[%s4 + $0xb0] sm:$0xf]
    %v212 = vld [vmem:[%s4 + $0xb4] sm:$0xf]
    %v213 = vld [vmem:[%s4 + $0xb8] sm:$0xf]
    %v214 = vld [vmem:[%s4 + $0xbc] sm:$0xf]
    %v215 = vld [vmem:[%s5] sm:$0x1]
    %v217 = vperm.slane %v215, 0
    %v267 = vunpack.c.l.b16 %v167
    %v268 = vunpack.c.l.b16 %v168
    %v269 = vunpack.c.l.b16 %v169
    %v270 = vunpack.c.l.b16 %v170
    %v271 = vunpack.c.l.b16 %v171
    %v272 = vunpack.c.l.b16 %v172
    %v273 = vunpack.c.l.b16 %v173
    %v274 = vunpack.c.l.b16 %v174
    %v275 = vunpack.c.l.b16 %v175
    %v276 = vunpack.c.l.b16 %v176
    %v277 = vunpack.c.l.b16 %v177
    %v278 = vunpack.c.l.b16 %v178
    %v279 = vunpack.c.l.b16 %v179
    %v280 = vunpack.c.l.b16 %v180
    %v281 = vunpack.c.l.b16 %v181
    %v282 = vunpack.c.l.b16 %v182
    %v283 = vunpack.c.l.b16 %v183
    %v284 = vunpack.c.l.b16 %v184
    %v285 = vunpack.c.l.b16 %v185
    %v286 = vunpack.c.l.b16 %v186
    %v287 = vunpack.c.l.b16 %v187
    %v288 = vunpack.c.l.b16 %v188
    %v289 = vunpack.c.l.b16 %v189
    %v290 = vunpack.c.l.b16 %v190
    %v291 = vunpack.c.l.b16 %v191
    %v292 = vunpack.c.l.b16 %v192
    %v293 = vunpack.c.l.b16 %v193
    %v294 = vunpack.c.l.b16 %v194
    %v295 = vunpack.c.l.b16 %v195
    %v296 = vunpack.c.l.b16 %v196
    %v297 = vunpack.c.l.b16 %v197
    %v298 = vunpack.c.l.b16 %v198
    %v299 = vunpack.c.l.b16 %v199
    %v300 = vunpack.c.l.b16 %v200
    %v301 = vunpack.c.l.b16 %v201
    %v302 = vunpack.c.l.b16 %v202
    %v303 = vunpack.c.l.b16 %v203
    %v304 = vunpack.c.l.b16 %v204
    %v305 = vunpack.c.l.b16 %v205
    %v306 = vunpack.c.l.b16 %v206
    %v307 = vunpack.c.l.b16 %v207
    %v308 = vunpack.c.l.b16 %v208
    %v309 = vunpack.c.l.b16 %v209
    %v310 = vunpack.c.l.b16 %v210
    %v311 = vunpack.c.l.b16 %v211
    %v312 = vunpack.c.l.b16 %v212
    %v313 = vunpack.c.l.b16 %v213
    %v314 = vunpack.c.l.b16 %v214
    %v315 = vpack.c.b16 %v268, %v267
    %v316 = vpack.c.b16 %v270, %v269
    %v317 = vpack.c.b16 %v272, %v271
    %v318 = vpack.c.b16 %v274, %v273
    %v319 = vpack.c.b16 %v276, %v275
    %v320 = vpack.c.b16 %v278, %v277
    %v321 = vpack.c.b16 %v280, %v279
    %v322 = vpack.c.b16 %v282, %v281
    %v323 = vpack.c.b16 %v284, %v283
    %v324 = vpack.c.b16 %v286, %v285
    %v325 = vpack.c.b16 %v288, %v287
    %v326 = vpack.c.b16 %v290, %v289
    %v327 = vpack.c.b16 %v292, %v291
    %v328 = vpack.c.b16 %v294, %v293
    %v329 = vpack.c.b16 %v296, %v295
    %v330 = vpack.c.b16 %v298, %v297
    %v331 = vpack.c.b16 %v300, %v299
    %v332 = vpack.c.b16 %v302, %v301
    %v333 = vpack.c.b16 %v304, %v303
    %v334 = vpack.c.b16 %v306, %v305
    %v335 = vpack.c.b16 %v308, %v307
    %v336 = vpack.c.b16 %v310, %v309
    %v337 = vpack.c.b16 %v312, %v311
    %v338 = vpack.c.b16 %v314, %v313
    %363 = vmatpush.bf16.msra.mxu0 %v322
    %364 = vmatpush.bf16.msra.mxu0 %v321
    %365 = vmatpush.bf16.msra.mxu0 %v320
    %366 = vmatpush.bf16.msra.mxu0 %v319
    %367 = vmatpush.bf16.msra.mxu0 %v318
    %368 = vmatpush.bf16.msra.mxu0 %v317
    %369 = vmatpush.bf16.msra.mxu0 %v316
    %370 = vmatpush.bf16.msra.mxu0 %v315
    %371 = vmatmul.bf16.gmra.mxu0 %v164
    %v372 = vpop.f32.mrf.mxu0
    %v373 = vadd.f32 %v217, %v372
    %v374 = vpop.f32.mrf.mxu0
    %v375 = vadd.f32 %v217, %v374
    %376 = vdwg.mxu0
    %377 = vmatpush.bf16.msra.mxu0 %v330
    %378 = vmatpush.bf16.msra.mxu0 %v329
    %379 = vmatpush.bf16.msra.mxu0 %v328
    %380 = vmatpush.bf16.msra.mxu0 %v327
    %381 = vmatpush.bf16.msra.mxu0 %v326
    %382 = vmatpush.bf16.msra.mxu0 %v325
    %383 = vmatpush.bf16.msra.mxu0 %v324
    %384 = vmatpush.bf16.msra.mxu0 %v323
    %385 = vmatmul.bf16.gmra.mxu0 %v165
    %v386 = vpop.f32.mrf.mxu0
    %v387 = vadd.f32 %v373, %v386
    %v388 = vpop.f32.mrf.mxu0
    %v389 = vadd.f32 %v375, %v388
    %390 = vdwg.mxu0
    %391 = vmatpush.bf16.msra.mxu0 %v338
    %392 = vmatpush.bf16.msra.mxu0 %v337
    %393 = vmatpush.bf16.msra.mxu0 %v336
    %394 = vmatpush.bf16.msra.mxu0 %v335
    %395 = vmatpush.bf16.msra.mxu0 %v334
    %396 = vmatpush.bf16.msra.mxu0 %v333
    %397 = vmatpush.bf16.msra.mxu0 %v332
    %398 = vmatpush.bf16.msra.mxu0 %v331
    %399 = vmatmul.bf16.gmra.mxu0 %v166
    %v400 = vpop.f32.mrf.mxu0
    %v401 = vadd.f32 %v387, %v400
    %v402 = vpop.f32.mrf.mxu0
    %v403 = vadd.f32 %v389, %v402
    %404 = vdwg.mxu0
    %v405 = vmax.f32 %v401, 0.0
    %v406 = vmax.f32 %v403, 0.0
    %v407 = vld [vmem:[%s1] sm:$0xff]
    %v408 = vld [vmem:[%s1 + $0x8] sm:$0xff]
    %v409 = vadd.f32 %v405, %v407
    %v410 = vadd.f32 %v406, %v408
    %v412 = vrot.slane %v409, 2
    %413 = vrot.lane.b32.xlu0 %v412, 64
    %v414 = vpop.permute.xlu0 %413
    %v416 = vrot.slane %v409, 4
    %v418 = vrot.slane %v409, 6
    %419 = vrot.lane.b32.xlu0 %v418, 64
    %v420 = vpop.permute.xlu0 %419
    %v423 = vrot.slane %v410, 2
    %424 = vrot.lane.b32.xlu0 %v423, 64
    %v425 = vpop.permute.xlu0 %424
    %v427 = vrot.slane %v410, 4
    %v429 = vrot.slane %v410, 6
    %430 = vrot.lane.b32.xlu0 %v429, 64
    %v431 = vpop.permute.xlu0 %430
    %vm433 = vcmask 523264
    %v434 = vsel %vm433, %v409, %v414
    %v435 = vsel %vm433, %v416, %v420
    %v436 = vsel %vm433, %v410, %v425
    %v437 = vsel %vm433, %v427, %v431
    %v438 = vpack.c.bf16 %v434, %v434
    %v439 = vpack.c.bf16 %v435, %v435
    %v440 = vpack.c.bf16 %v436, %v436
    %v441 = vpack.c.bf16 %v437, %v437
    %v442 = vld [vmem:[#allocation2] sm:$0xff]
    %v443 = vld [vmem:[#allocation2 + $0x8] sm:$0xff]
    %v444 = vld [vmem:[#allocation2 + $0x10] sm:$0xff]
    %v445 = vld [vmem:[#allocation2 + $0x18] sm:$0xff]
    %v446 = vld [vmem:[#allocation2 + $0x20] sm:$0xff]
    %v447 = vld [vmem:[#allocation2 + $0x28] sm:$0xff]
    %v448 = vld [vmem:[#allocation2 + $0x30] sm:$0xff]
    %v449 = vld [vmem:[#allocation2 + $0x38] sm:$0xff]
    %v450 = vld [vmem:[#allocation2 + $0x40] sm:$0xff]
    %v451 = vld [vmem:[#allocation2 + $0x48] sm:$0xff]
    %v452 = vld [vmem:[#allocation2 + $0x50] sm:$0xff]
    %v453 = vld [vmem:[#allocation2 + $0x58] sm:$0xff]
    %v454 = vld [vmem:[#allocation2 + $0x60] sm:$0xff]
    %v455 = vld [vmem:[#allocation2 + $0x68] sm:$0xff]
    %v456 = vld [vmem:[#allocation2 + $0x70] sm:$0xff]
    %v457 = vld [vmem:[#allocation2 + $0x78] sm:$0xff]
    %v458 = vld [vmem:[#allocation2 + $0x80] sm:$0xff]
    %v459 = vld [vmem:[#allocation2 + $0x88] sm:$0xff]
    %v460 = vld [vmem:[#allocation2 + $0x90] sm:$0xff]
    %v461 = vld [vmem:[#allocation2 + $0x98] sm:$0xff]
    %v462 = vld [vmem:[#allocation2 + $0xa0] sm:$0xff]
    %v463 = vld [vmem:[#allocation2 + $0xa8] sm:$0xff]
    %v464 = vld [vmem:[#allocation2 + $0xb0] sm:$0xff]
    %v465 = vld [vmem:[#allocation2 + $0xb8] sm:$0xff]
    %v466 = vld [vmem:[#allocation2 + $0xc0] sm:$0xff]
    %v467 = vld [vmem:[#allocation2 + $0xc8] sm:$0xff]
    %v468 = vld [vmem:[#allocation2 + $0xd0] sm:$0xff]
    %v469 = vld [vmem:[#allocation2 + $0xd8] sm:$0xff]
    %v470 = vld [vmem:[#allocation2 + $0xe0] sm:$0xff]
    %v471 = vld [vmem:[#allocation2 + $0xe8] sm:$0xff]
    %v472 = vld [vmem:[#allocation2 + $0xf0] sm:$0xff]
    %v473 = vld [vmem:[#allocation2 + $0xf8] sm:$0xff]
    %v474 = vld [vmem:[#allocation2 + $0x100] sm:$0xff]
    %v475 = vld [vmem:[#allocation2 + $0x108] sm:$0xff]
    %v476 = vld [vmem:[#allocation2 + $0x110] sm:$0xff]
    %v477 = vld [vmem:[#allocation2 + $0x118] sm:$0xff]
    %v478 = vld [vmem:[#allocation2 + $0x120] sm:$0xff]
    %v479 = vld [vmem:[#allocation2 + $0x128] sm:$0xff]
    %v480 = vld [vmem:[#allocation2 + $0x130] sm:$0xff]
    %v481 = vld [vmem:[#allocation2 + $0x138] sm:$0xff]
    %v482 = vld [vmem:[#allocation2 + $0x140] sm:$0xff]
    %v483 = vld [vmem:[#allocation2 + $0x148] sm:$0xff]
    %v484 = vld [vmem:[#allocation2 + $0x150] sm:$0xff]
    %v485 = vld [vmem:[#allocation2 + $0x158] sm:$0xff]
    %v486 = vld [vmem:[#allocation2 + $0x160] sm:$0xff]
    %v487 = vld [vmem:[#allocation2 + $0x168] sm:$0xff]
    %v488 = vld [vmem:[#allocation2 + $0x170] sm:$0xff]
    %v489 = vld [vmem:[#allocation2 + $0x178] sm:$0xff]
    %v490 = vld [vmem:[#allocation2 + $0x180] sm:$0xff]
    %v491 = vld [vmem:[#allocation2 + $0x188] sm:$0xff]
    %v492 = vld [vmem:[#allocation2 + $0x190] sm:$0xff]
    %v493 = vld [vmem:[#allocation2 + $0x198] sm:$0xff]
    %v494 = vld [vmem:[#allocation2 + $0x1a0] sm:$0xff]
    %v495 = vld [vmem:[#allocation2 + $0x1a8] sm:$0xff]
    %v496 = vld [vmem:[#allocation2 + $0x1b0] sm:$0xff]
    %v497 = vld [vmem:[#allocation2 + $0x1b8] sm:$0xff]
    %v498 = vld [vmem:[#allocation2 + $0x1c0] sm:$0xff]
    %v499 = vld [vmem:[#allocation2 + $0x1c8] sm:$0xff]
    %v500 = vld [vmem:[#allocation2 + $0x1d0] sm:$0xff]
    %v501 = vld [vmem:[#allocation2 + $0x1d8] sm:$0xff]
    %v502 = vld [vmem:[#allocation2 + $0x1e0] sm:$0xff]
    %v503 = vld [vmem:[#allocation2 + $0x1e8] sm:$0xff]
    %v504 = vld [vmem:[#allocation2 + $0x1f0] sm:$0xff]
    %v505 = vld [vmem:[#allocation2 + $0x1f8] sm:$0xff]
    %v506 = vld [vmem:[%s7] sm:$0x3]
    %v508 = vperm.slane %v506, 0
    %v509 = vperm.slane %v506, 1
    %v576 = vunpack.c.l.b16 %v442
    %v577 = vunpack.c.h.b16 %v442
    %v578 = vunpack.c.l.b16 %v443
    %v579 = vunpack.c.h.b16 %v443
    %v580 = vunpack.c.l.b16 %v444
    %v581 = vunpack.c.h.b16 %v444
    %v582 = vunpack.c.l.b16 %v445
    %v583 = vunpack.c.h.b16 %v445
    %v584 = vunpack.c.l.b16 %v446
    %v585 = vunpack.c.h.b16 %v446
    %v586 = vunpack.c.l.b16 %v447
    %v587 = vunpack.c.h.b16 %v447
    %v588 = vunpack.c.l.b16 %v448
    %v589 = vunpack.c.h.b16 %v448
    %v590 = vunpack.c.l.b16 %v449
    %v591 = vunpack.c.h.b16 %v449
    %v592 = vunpack.c.l.b16 %v450
    %v593 = vunpack.c.h.b16 %v450
    %v594 = vunpack.c.l.b16 %v451
    %v595 = vunpack.c.h.b16 %v451
    %v596 = vunpack.c.l.b16 %v452
    %v597 = vunpack.c.h.b16 %v452
    %v598 = vunpack.c.l.b16 %v453
    %v599 = vunpack.c.h.b16 %v453
    %v600 = vunpack.c.l.b16 %v454
    %v601 = vunpack.c.h.b16 %v454
    %v602 = vunpack.c.l.b16 %v455
    %v603 = vunpack.c.h.b16 %v455
    %v604 = vunpack.c.l.b16 %v456
    %v605 = vunpack.c.h.b16 %v456
    %v606 = vunpack.c.l.b16 %v457
    %v607 = vunpack.c.h.b16 %v457
    %v608 = vunpack.c.l.b16 %v458
    %v609 = vunpack.c.h.b16 %v458
    %v610 = vunpack.c.l.b16 %v459
    %v611 = vunpack.c.h.b16 %v459
    %v612 = vunpack.c.l.b16 %v460
    %v613 = vunpack.c.h.b16 %v460
    %v614 = vunpack.c.l.b16 %v461
    %v615 = vunpack.c.h.b16 %v461
    %v616 = vunpack.c.l.b16 %v462
    %v617 = vunpack.c.h.b16 %v462
    %v618 = vunpack.c.l.b16 %v463
    %v619 = vunpack.c.h.b16 %v463
    %v620 = vunpack.c.l.b16 %v464
    %v621 = vunpack.c.h.b16 %v464
    %v622 = vunpack.c.l.b16 %v465
    %v623 = vunpack.c.h.b16 %v465
    %v624 = vunpack.c.l.b16 %v466
    %v625 = vunpack.c.h.b16 %v466
    %v626 = vunpack.c.l.b16 %v467
    %v627 = vunpack.c.h.b16 %v467
    %v628 = vunpack.c.l.b16 %v468
    %v629 = vunpack.c.h.b16 %v468
    %v630 = vunpack.c.l.b16 %v469
    %v631 = vunpack.c.h.b16 %v469
    %v632 = vunpack.c.l.b16 %v470
    %v633 = vunpack.c.h.b16 %v470
    %v634 = vunpack.c.l.b16 %v471
    %v635 = vunpack.c.h.b16 %v471
    %v636 = vunpack.c.l.b16 %v472
    %v637 = vunpack.c.h.b16 %v472
    %v638 = vunpack.c.l.b16 %v473
    %v639 = vunpack.c.h.b16 %v473
    %v640 = vunpack.c.l.b16 %v474
    %v641 = vunpack.c.h.b16 %v474
    %v642 = vunpack.c.l.b16 %v475
    %v643 = vunpack.c.h.b16 %v475
    %v644 = vunpack.c.l.b16 %v476
    %v645 = vunpack.c.h.b16 %v476
    %v646 = vunpack.c.l.b16 %v477
    %v647 = vunpack.c.h.b16 %v477
    %v648 = vunpack.c.l.b16 %v478
    %v649 = vunpack.c.h.b16 %v478
    %v650 = vunpack.c.l.b16 %v479
    %v651 = vunpack.c.h.b16 %v479
    %v652 = vunpack.c.l.b16 %v480
    %v653 = vunpack.c.h.b16 %v480
    %v654 = vunpack.c.l.b16 %v481
    %v655 = vunpack.c.h.b16 %v481
    %v656 = vunpack.c.l.b16 %v482
    %v657 = vunpack.c.h.b16 %v482
    %v658 = vunpack.c.l.b16 %v483
    %v659 = vunpack.c.h.b16 %v483
    %v660 = vunpack.c.l.b16 %v484
    %v661 = vunpack.c.h.b16 %v484
    %v662 = vunpack.c.l.b16 %v485
    %v663 = vunpack.c.h.b16 %v485
    %v664 = vunpack.c.l.b16 %v486
    %v665 = vunpack.c.h.b16 %v486
    %v666 = vunpack.c.l.b16 %v487
    %v667 = vunpack.c.h.b16 %v487
    %v668 = vunpack.c.l.b16 %v488
    %v669 = vunpack.c.h.b16 %v488
    %v670 = vunpack.c.l.b16 %v489
    %v671 = vunpack.c.h.b16 %v489
    %v672 = vunpack.c.l.b16 %v490
    %v673 = vunpack.c.h.b16 %v490
    %v674 = vunpack.c.l.b16 %v491
    %v675 = vunpack.c.h.b16 %v491
    %v676 = vunpack.c.l.b16 %v492
    %v677 = vunpack.c.h.b16 %v492
    %v678 = vunpack.c.l.b16 %v493
    %v679 = vunpack.c.h.b16 %v493
    %v680 = vunpack.c.l.b16 %v494
    %v681 = vunpack.c.h.b16 %v494
    %v682 = vunpack.c.l.b16 %v495
    %v683 = vunpack.c.h.b16 %v495
    %v684 = vunpack.c.l.b16 %v496
    %v685 = vunpack.c.h.b16 %v496
    %v686 = vunpack.c.l.b16 %v497
    %v687 = vunpack.c.h.b16 %v497
    %v688 = vunpack.c.l.b16 %v498
    %v689 = vunpack.c.h.b16 %v498
    %v690 = vunpack.c.l.b16 %v499
    %v691 = vunpack.c.h.b16 %v499
    %v692 = vunpack.c.l.b16 %v500
    %v693 = vunpack.c.h.b16 %v500
    %v694 = vunpack.c.l.b16 %v501
    %v695 = vunpack.c.h.b16 %v501
    %v696 = vunpack.c.l.b16 %v502
    %v697 = vunpack.c.h.b16 %v502
    %v698 = vunpack.c.l.b16 %v503
    %v699 = vunpack.c.h.b16 %v503
    %v700 = vunpack.c.l.b16 %v504
    %v701 = vunpack.c.h.b16 %v504
    %v702 = vunpack.c.l.b16 %v505
    %v703 = vunpack.c.h.b16 %v505
    %v704 = vpack.c.b16 %v578, %v576
    %v705 = vpack.c.b16 %v579, %v577
    %v706 = vpack.c.b16 %v582, %v580
    %v707 = vpack.c.b16 %v583, %v581
    %v708 = vpack.c.b16 %v586, %v584
    %v709 = vpack.c.b16 %v587, %v585
    %v710 = vpack.c.b16 %v590, %v588
    %v711 = vpack.c.b16 %v591, %v589
    %v712 = vpack.c.b16 %v594, %v592
    %v713 = vpack.c.b16 %v595, %v593
    %v714 = vpack.c.b16 %v598, %v596
    %v715 = vpack.c.b16 %v599, %v597
    %v716 = vpack.c.b16 %v602, %v600
    %v717 = vpack.c.b16 %v603, %v601
    %v718 = vpack.c.b16 %v606, %v604
    %v719 = vpack.c.b16 %v607, %v605
    %v720 = vpack.c.b16 %v610, %v608
    %v721 = vpack.c.b16 %v611, %v609
    %v722 = vpack.c.b16 %v614, %v612
    %v723 = vpack.c.b16 %v615, %v613
    %v724 = vpack.c.b16 %v618, %v616
    %v725 = vpack.c.b16 %v619, %v617
    %v726 = vpack.c.b16 %v622, %v620
    %v727 = vpack.c.b16 %v623, %v621
    %v728 = vpack.c.b16 %v626, %v624
    %v729 = vpack.c.b16 %v627, %v625
    %v730 = vpack.c.b16 %v630, %v628
    %v731 = vpack.c.b16 %v631, %v629
    %v732 = vpack.c.b16 %v634, %v632
    %v733 = vpack.c.b16 %v635, %v633
    %v734 = vpack.c.b16 %v638, %v636
    %v735 = vpack.c.b16 %v639, %v637
    %v736 = vpack.c.b16 %v642, %v640
    %v737 = vpack.c.b16 %v643, %v641
    %v738 = vpack.c.b16 %v646, %v644
    %v739 = vpack.c.b16 %v647, %v645
    %v740 = vpack.c.b16 %v650, %v648
    %v741 = vpack.c.b16 %v651, %v649
    %v742 = vpack.c.b16 %v654, %v652
    %v743 = vpack.c.b16 %v655, %v653
    %v744 = vpack.c.b16 %v658, %v656
    %v745 = vpack.c.b16 %v659, %v657
    %v746 = vpack.c.b16 %v662, %v660
    %v747 = vpack.c.b16 %v663, %v661
    %v748 = vpack.c.b16 %v666, %v664
    %v749 = vpack.c.b16 %v667, %v665
    %v750 = vpack.c.b16 %v670, %v668
    %v751 = vpack.c.b16 %v671, %v669
    %v752 = vpack.c.b16 %v674, %v672
    %v753 = vpack.c.b16 %v675, %v673
    %v754 = vpack.c.b16 %v678, %v676
    %v755 = vpack.c.b16 %v679, %v677
    %v756 = vpack.c.b16 %v682, %v680
    %v757 = vpack.c.b16 %v683, %v681
    %v758 = vpack.c.b16 %v686, %v684
    %v759 = vpack.c.b16 %v687, %v685
    %v760 = vpack.c.b16 %v690, %v688
    %v761 = vpack.c.b16 %v691, %v689
    %v762 = vpack.c.b16 %v694, %v692
    %v763 = vpack.c.b16 %v695, %v693
    %v764 = vpack.c.b16 %v698, %v696
    %v765 = vpack.c.b16 %v699, %v697
    %v766 = vpack.c.b16 %v702, %v700
    %v767 = vpack.c.b16 %v703, %v701
    %832 = vmatpush.bf16.msra.mxu0 %v718
    %833 = vmatpush.bf16.msra.mxu0 %v716
    %834 = vmatpush.bf16.msra.mxu0 %v714
    %835 = vmatpush.bf16.msra.mxu0 %v712
    %836 = vmatpush.bf16.msra.mxu0 %v710
    %837 = vmatpush.bf16.msra.mxu0 %v708
    %838 = vmatpush.bf16.msra.mxu0 %v706
    %839 = vmatpush.bf16.msra.mxu0 %v704
    %840 = vmatmul.bf16.gmra.mxu0 %v438
    %v841 = vpop.f32.mrf.mxu0
    %v842 = vadd.f32 %v508, %v841
    %v843 = vpop.f32.mrf.mxu0
    %844 = vdwg.mxu0
    %845 = vmatpush.bf16.msra.mxu0 %v734
    %846 = vmatpush.bf16.msra.mxu0 %v732
    %847 = vmatpush.bf16.msra.mxu0 %v730
    %848 = vmatpush.bf16.msra.mxu0 %v728
    %849 = vmatpush.bf16.msra.mxu0 %v726
    %850 = vmatpush.bf16.msra.mxu0 %v724
    %851 = vmatpush.bf16.msra.mxu0 %v722
    %852 = vmatpush.bf16.msra.mxu0 %v720
    %853 = vmatmul.bf16.gmra.mxu0 %v439
    %v854 = vpop.f32.mrf.mxu0
    %v855 = vadd.f32 %v842, %v854
    %v856 = vpop.f32.mrf.mxu0
    %857 = vdwg.mxu0
    %858 = vmatpush.bf16.msra.mxu0 %v750
    %859 = vmatpush.bf16.msra.mxu0 %v748
    %860 = vmatpush.bf16.msra.mxu0 %v746
    %861 = vmatpush.bf16.msra.mxu0 %v744
    %862 = vmatpush.bf16.msra.mxu0 %v742
    %863 = vmatpush.bf16.msra.mxu0 %v740
    %864 = vmatpush.bf16.msra.mxu0 %v738
    %865 = vmatpush.bf16.msra.mxu0 %v736
    %866 = vmatmul.bf16.gmra.mxu0 %v440
    %v867 = vpop.f32.mrf.mxu0
    %v868 = vadd.f32 %v855, %v867
    %v869 = vpop.f32.mrf.mxu0
    %870 = vdwg.mxu0
    %871 = vmatpush.bf16.msra.mxu0 %v766
    %872 = vmatpush.bf16.msra.mxu0 %v764
    %873 = vmatpush.bf16.msra.mxu0 %v762
    %874 = vmatpush.bf16.msra.mxu0 %v760
    %875 = vmatpush.bf16.msra.mxu0 %v758
    %876 = vmatpush.bf16.msra.mxu0 %v756
    %877 = vmatpush.bf16.msra.mxu0 %v754
    %878 = vmatpush.bf16.msra.mxu0 %v752
    %879 = vmatmul.bf16.gmra.mxu0 %v441
    %v880 = vpop.f32.mrf.mxu0
    %v881 = vadd.f32 %v868, %v880
    %v882 = vpop.f32.mrf.mxu0
    %883 = vdwg.mxu0
    %884 = vmatpush.bf16.msra.mxu0 %v719
    %885 = vmatpush.bf16.msra.mxu0 %v717
    %886 = vmatpush.bf16.msra.mxu0 %v715
    %887 = vmatpush.bf16.msra.mxu0 %v713
    %888 = vmatpush.bf16.msra.mxu0 %v711
    %889 = vmatpush.bf16.msra.mxu0 %v709
    %890 = vmatpush.bf16.msra.mxu0 %v707
    %891 = vmatpush.bf16.msra.mxu0 %v705
    %892 = vmatmul.bf16.gmra.mxu0 %v438
    %v893 = vpop.f32.mrf.mxu0
    %v894 = vadd.f32 %v509, %v893
    %v895 = vpop.f32.mrf.mxu0
    %896 = vdwg.mxu0
    %897 = vmatpush.bf16.msra.mxu0 %v735
    %898 = vmatpush.bf16.msra.mxu0 %v733
    %899 = vmatpush.bf16.msra.mxu0 %v731
    %900 = vmatpush.bf16.msra.mxu0 %v729
    %901 = vmatpush.bf16.msra.mxu0 %v727
    %902 = vmatpush.bf16.msra.mxu0 %v725
    %903 = vmatpush.bf16.msra.mxu0 %v723
    %904 = vmatpush.bf16.msra.mxu0 %v721
    %905 = vmatmul.bf16.gmra.mxu0 %v439
    %v906 = vpop.f32.mrf.mxu0
    %v907 = vadd.f32 %v894, %v906
    %v908 = vpop.f32.mrf.mxu0
    %909 = vdwg.mxu0
    %910 = vmatpush.bf16.msra.mxu0 %v751
    %911 = vmatpush.bf16.msra.mxu0 %v749
    %912 = vmatpush.bf16.msra.mxu0 %v747
    %913 = vmatpush.bf16.msra.mxu0 %v745
    %914 = vmatpush.bf16.msra.mxu0 %v743
    %915 = vmatpush.bf16.msra.mxu0 %v741
    %916 = vmatpush.bf16.msra.mxu0 %v739
    %917 = vmatpush.bf16.msra.mxu0 %v737
    %918 = vmatmul.bf16.gmra.mxu0 %v440
    %v919 = vpop.f32.mrf.mxu0
    %v920 = vadd.f32 %v907, %v919
    %v921 = vpop.f32.mrf.mxu0
    %922 = vdwg.mxu0
    %923 = vmatpush.bf16.msra.mxu0 %v767
    %924 = vmatpush.bf16.msra.mxu0 %v765
    %925 = vmatpush.bf16.msra.mxu0 %v763
    %926 = vmatpush.bf16.msra.mxu0 %v761
    %927 = vmatpush.bf16.msra.mxu0 %v759
    %928 = vmatpush.bf16.msra.mxu0 %v757
    %929 = vmatpush.bf16.msra.mxu0 %v755
    %930 = vmatpush.bf16.msra.mxu0 %v753
    %931 = vmatmul.bf16.gmra.mxu0 %v441
    %v932 = vpop.f32.mrf.mxu0
    %v933 = vadd.f32 %v920, %v932
    %v934 = vpop.f32.mrf.mxu0
    %935 = vdwg.mxu0
    %v938 = vrot.slane %v933, 6
    %vm939 = vcmask 1041408
    %v940 = vsel %vm939, %v881, %v938
    %942 = vst [vmem:[#allocation5] sm:$0xf] %v940
    // Predicated region
    $region38: #{postnet_forward.1} parent=1 // pred_check
      _
    $region39: #{postnet_forward.1} parent=1 // pred_check_branch
      %944 = sbr.rel (0) target = $region41
    $region40: #{postnet_forward.1} parent=1 // pred_region
      %946 = vsyncadd [#allocation4], 0
      %s948 = sshll.u32 [#allocation5], 4
      %s949 = int_to_ptr.vmem [resolvable:$true] %s948
      %s950 = sshll.u32 %s8, 4
      %s951 = int_to_ptr.hbm [resolvable:$true] %s950
      %953 = dma.vmem_to_hbm [thread:$0]  %s949, 64, %s951, [#allocation4]
    $region41: #{postnet_forward.1} parent=1 // pred_fallthru
      _
    // Predicated region
    $region42: #{postnet_forward.1} parent=1 // pred_check
      _
    $region43: #{postnet_forward.1} parent=1 // pred_check_branch
      %955 = sbr.rel (0) target = $region45
    $region44: #{postnet_forward.1} parent=1 // pred_region
      %957 = dma.done [#allocation4], 64
    $region45: #{postnet_forward.1} parent=1 // pred_fallthru
      _
    %958 = vsyncpa [#allocation3], 1
    %959 = vsyncpa [#allocation4], 1

</llo_original>
